<compile_context>
chip_gen: v5e
topology: v5e:2x2
jax: 0.10.0
libtpu: 0.0.40
codegen_flags: <defaults>
</compile_context>

<pallas_src>
import functools
import math

import jax
import jax.numpy as jnp
from jax.experimental import pallas as pl
from jax.experimental.pallas import tpu as pltpu


def _masked_softmax_kernel(x_ref, mask_ref, o_ref, *, scale, compute_dtype,
                           approx_reciprocal):
    # x_ref / o_ref: (1, bm, bi, Sk); mask_ref: (1, 1, bi, Sk) (broadcast over bm).
    x = x_ref[...].astype(compute_dtype)
    if scale != 1.0:
        x = x * jnp.asarray(scale, dtype=compute_dtype)
    m = mask_ref[...]
    masked = m if m.dtype == jnp.bool_ else (m != 0)
    # nonzero mask -> filled with -10000 (matches torch masked_fill_).
    x = jnp.where(masked, jnp.asarray(-10000.0, dtype=compute_dtype), x)
    # Numerically stable softmax over the last axis.
    x_max = jnp.max(x, axis=-1, keepdims=True)
    e = jnp.exp(x - x_max)
    denom = jnp.sum(e, axis=-1, keepdims=True)
    if approx_reciprocal:
        # EUP reciprocal (separate issue slot from the VPU); ~1e-3 rel error.
        inv = pl.reciprocal(denom.astype(jnp.float32), approx=True)
        probs = e * inv.astype(compute_dtype)
    else:
        probs = e / denom
    o_ref[...] = probs.astype(o_ref.dtype)


def _round_up(v: int, m: int) -> int:
    return ((v + m - 1) // m) * m


def _factor_mask(x_shape, mask_shape):
    """Factor x's leading dims as outer*mid*inner so the mask is constant along
    `mid` (a contiguous run of broadcast dims). Returns
    (outer, mid, inner, mask_broadcast_shape) or None if unsupported."""
    nd = len(x_shape)
    ms = (1,) * (nd - len(mask_shape)) + tuple(mask_shape)
    if ms[-1] != x_shape[-1]:
        return None  # mask must cover the softmax (last) axis
    lead_x, lead_m = x_shape[:-1], ms[:-1]
    if any(m not in (1, xd) for m, xd in zip(lead_m, lead_x)):
        return None  # not broadcastable against x
    run = [i for i, (m, xd) in enumerate(zip(lead_m, lead_x)) if m == 1 and xd > 1]
    # Keep the innermost leading (query-like) dim materialized so mask rows stay
    # sublane-dense; broadcasting along it in the wrapper is cheap (no B*H blowup).
    if run and run[-1] == len(lead_x) - 1:
        run = run[:-1]
    if run and (run[-1] - run[0] + 1 != len(run)):
        return None  # non-contiguous broadcast pattern
    if not run:
        outer, mid, inner = 1, 1, math.prod(lead_x)
        bshape = tuple(x_shape)
    else:
        lo, hi = run[0], run[-1]
        outer = math.prod(lead_x[:lo])
        mid = math.prod(lead_x[lo:hi + 1])
        inner = math.prod(lead_x[hi + 1:])
        bshape = tuple(1 if lo <= i <= hi else x_shape[i] for i in range(nd - 1))
        bshape = bshape + (x_shape[-1],)
    return outer, mid, inner, bshape


def _choose_blocks(outer, mid, inner, sk, x_bytes, out_bytes, mask_bytes,
                   vmem_tile_budget_bytes):
    # Per row-of-Sk VMEM footprint: double-buffered x / out / mask blocks plus
    # ~4 fp32-sized in-kernel temporaries (upcast x, e, probs, compare result).
    per_row = sk * (2 * (x_bytes + out_bytes + mask_bytes) + 4 * 4)
    target = max(8, vmem_tile_budget_bytes // per_row)
    total_rows = outer * mid * inner
    # Keep >= ~8 grid steps (>= 4 per TensorCore) so the BlockSpec pipeline has
    # blocks to prefetch / write back and the megacore split stays balanced.
    target = min(target, max(32, _round_up(pl.cdiv(total_rows, 8), 32)))
    if target >= inner:
        bi = inner                                    # full dim: always legal
        bm = max(1, min(mid, target // max(inner, 1)))
    else:
        bi = max(32, (target // 32) * 32)             # 32: int8 mask sublane tile
        if bi >= inner:
            bi = inner
        bm = 1
    # TODO(synk): for extremely long Sk (where even a 32-row block exceeds the
    # VMEM budget) a flash-style two-pass reduction over Sk tiles is needed.
    return bm, bi


def masked_softmax(
    x: jax.Array,
    mask: jax.Array,
    *,
    scale: float = 1.0,
    softmax_in_fp32: bool = True,
    approx_reciprocal: bool = True,
    vmem_tile_budget_bytes: int = 8 * 1024 * 1024,
) -> jax.Array:
    """Pallas TPU masked softmax over the last axis.

    x:    [..., Sk] floating point.
    mask: broadcastable to x.shape; True / nonzero -> filled with -10000 before
          the softmax (matching torch masked_fill_).
    """
    orig_shape = x.shape
    orig_dtype = x.dtype
    sk = orig_shape[-1]

    if softmax_in_fp32 and orig_dtype != jnp.float32:
        compute_dtype = jnp.float32
    else:
        compute_dtype = orig_dtype
    out_dtype = orig_dtype

    # Keep the mask in its native 1-byte/4-byte integer dtype (no extra HBM
    # conversion pass). Only bool is converted (byte-for-byte) because i1
    # memrefs are the least robust input dtype for Mosaic.
    if mask.dtype == jnp.bool_:
        mask = mask.astype(jnp.int8)

    fact = _factor_mask(orig_shape, mask.shape)
    if fact is None:
        # TODO(synk): non-contiguous / exotic broadcast patterns fall back to a
        # fully materialized mask (one extra HBM pass over the mask only).
        mask = jnp.broadcast_to(mask, orig_shape)
        fact = _factor_mask(orig_shape, mask.shape)
    outer, mid, inner, mask_bshape = fact

    mask_p = mask.reshape((1,) * (x.ndim - mask.ndim) + mask.shape)
    if mask_p.shape != mask_bshape:
        mask_p = jnp.broadcast_to(mask_p, mask_bshape)  # small (no B*H blowup)
    x4 = x.reshape(outer, mid, inner, sk)
    m4 = mask_p.reshape(outer, 1, inner, sk)

    bm, bi = _choose_blocks(
        outer, mid, inner, sk,
        jnp.dtype(orig_dtype).itemsize,
        jnp.dtype(out_dtype).itemsize,
        jnp.dtype(m4.dtype).itemsize,
        vmem_tile_budget_bytes,
    )

    # No padding: pl.cdiv grid + Pallas-handled partial trailing blocks.
    grid = (outer, pl.cdiv(inner, bi), pl.cdiv(mid, bm))

    kernel = functools.partial(
        _masked_softmax_kernel,
        scale=float(scale),
        compute_dtype=compute_dtype,
        approx_reciprocal=approx_reciprocal,
    )

    out4 = pl.pallas_call(
        kernel,
        out_shape=jax.ShapeDtypeStruct((outer, mid, inner, sk), out_dtype),
        grid_spec=pltpu.PrefetchScalarGridSpec(
            num_scalar_prefetch=0,
            grid=grid,
            in_specs=[
                pl.BlockSpec((1, bm, bi, sk), lambda o, i, m: (o, m, i, 0)),
                # Mask block index is constant along the innermost (broadcast)
                # grid axis, so Pallas fetches each mask block from HBM once.
                pl.BlockSpec((1, 1, bi, sk), lambda o, i, m: (o, 0, i, 0)),
            ],
            out_specs=pl.BlockSpec((1, bm, bi, sk), lambda o, i, m: (o, m, i, 0)),
        ),
        compiler_params=pltpu.CompilerParams(
            dimension_semantics=("parallel", "parallel", "arbitrary"),
            # Well under v7x's 64 MiB physical VMEM; ~4x headroom over the
            # estimated tile working set.
            vmem_limit_bytes=32 * 1024 * 1024,
        ),
    )(x4, m4)

    return out4.reshape(orig_shape)


def _reference(x, mask, *, scale, softmax_in_fp32):
    # Pure-JAX reference mirroring MaskedSoftmaxTorch exactly.
    orig_dtype = x.dtype
    if softmax_in_fp32 and orig_dtype != jnp.float32:
        x = x.astype(jnp.float32)
    if scale != 1.0:
        x = x * scale
    x = jnp.where(mask.astype(bool), jnp.asarray(-10000.0, x.dtype), x)
    probs = jax.nn.softmax(x, axis=-1)
    if softmax_in_fp32 and orig_dtype != jnp.float32:
        probs = probs.astype(orig_dtype)
    return probs


if __name__ == "__main__":
    key = jax.random.PRNGKey(0)
    k1, k2, k3, k4, k5 = jax.random.split(key, 5)
    scale = 0.125  # e.g. 1/sqrt(head_dim)

    # 1) Full mask, bf16 activations: attention scores [B, H, Sq, Sk].
    B, H, SQ, SK = 2, 4, 16, 16
    x1 = jax.random.normal(k1, (B, H, SQ, SK), dtype=jnp.float32).astype(jnp.bfloat16)
    causal = jnp.triu(jnp.ones((SQ, SK), dtype=bool), k=1)
    mask1 = jnp.logical_or(causal[None, None],
                           jax.random.bernoulli(k2, p=0.2, shape=(B, H, SQ, SK)))
    eye = jnp.eye(SQ, SK, dtype=bool)[None, None]
    mask1 = jnp.where(eye, False, mask1)  # keep >= 1 visible position per row

    out1 = jax.block_until_ready(masked_softmax(x1, mask1, scale=scale))
    ref1 = _reference(x1, mask1, scale=scale, softmax_in_fp32=True)
    assert out1.shape == x1.shape and out1.dtype == x1.dtype
    err1 = float(jnp.max(jnp.abs(out1.astype(jnp.float32) - ref1.astype(jnp.float32))))
    assert err1 < 1e-2, f"full-mask max abs error too large: {err1}"

    # 2) Broadcast mask over heads ([B, 1, Sq, Sk]) -> mask streamed once.
    mask2 = jnp.logical_or(causal[None, None],
                           jax.random.bernoulli(k3, p=0.2, shape=(B, 1, SQ, SK)))
    mask2 = jnp.where(eye, False, mask2)
    out2 = jax.block_until_ready(masked_softmax(x1, mask2, scale=scale))
    ref2 = _reference(x1, mask2, scale=scale, softmax_in_fp32=True)
    assert out2.shape == x1.shape and out2.dtype == x1.dtype
    err2 = float(jnp.max(jnp.abs(out2.astype(jnp.float32) - ref2.astype(jnp.float32))))
    assert err2 < 1e-2, f"broadcast-mask max abs error too large: {err2}"

    # 3) fp32, row count (3*5*13 = 195) not divisible by the 32-row block:
    #    exercises the partial trailing block that replaced the jnp.pad path.
    B3, H3, SQ3, SK3 = 3, 5, 13, 16
    x3 = jax.random.normal(k4, (B3, H3, SQ3, SK3), dtype=jnp.float32)
    causal3 = jnp.triu(jnp.ones((SQ3, SK3), dtype=bool), k=1)
    mask3 = jnp.logical_or(causal3[None, None],
                           jax.random.bernoulli(k5, p=0.2, shape=x3.shape))
    out3 = jax.block_until_ready(masked_softmax(x3, mask3, scale=scale))
    ref3 = _reference(x3, mask3, scale=scale, softmax_in_fp32=True)
    assert out3.shape == x3.shape and out3.dtype == x3.dtype
    err3 = float(jnp.max(jnp.abs(out3 - ref3)))
    assert err3 < 1e-2, f"partial-block max abs error too large: {err3}"

    print("KERNEL_OK")
</pallas_src>

<mosaic_0001>
module attributes {stable_mosaic.version = 11 : i64} {
  func.func @_masked_softmax_kernel(%arg0: i32, %arg1: i32, %arg2: i32, %arg3: memref<1x1x32x16xbf16, #tpu.memory_space<vmem>>, %arg4: memref<1x1x32x16xi8, #tpu.memory_space<vmem>>, %arg5: memref<1x1x32x16xbf16, #tpu.memory_space<vmem>>) attributes {dimension_semantics = [#tpu.dimension_semantics<parallel>, #tpu.dimension_semantics<parallel>, #tpu.dimension_semantics<arbitrary>], iteration_bounds = array<i64: 1, 4, 1>, scalar_prefetch = 0 : i64, scratch_operands = 0 : i64, tpu.core_type = #tpu.core_type<tc>, window_params = [{transform_indices = @transform_0, window_bounds = array<i64: 1, 1, 32, 16>}, {transform_indices = @transform_1, window_bounds = array<i64: 1, 1, 32, 16>}, {transform_indices = @transform_2, window_bounds = array<i64: 1, 1, 32, 16>}]} {
    %c0 = arith.constant 0 : index
    %c0_0 = arith.constant 0 : index
    %c0_1 = arith.constant 0 : index
    %c0_2 = arith.constant 0 : index
    %0 = vector.load %arg3[%c0, %c0_0, %c0_1, %c0_2] : memref<1x1x32x16xbf16, #tpu.memory_space<vmem>>, vector<1x1x32x16xbf16>
    %1 = arith.extf %0 : vector<1x1x32x16xbf16> to vector<1x1x32x16xf32>
    %cst = arith.constant 1.250000e-01 : f32
    %2 = vector.broadcast %cst : f32 to vector<1x1x32x16xf32>
    %3 = arith.mulf %1, %2 : vector<1x1x32x16xf32>
    %c0_3 = arith.constant 0 : index
    %c0_4 = arith.constant 0 : index
    %c0_5 = arith.constant 0 : index
    %c0_6 = arith.constant 0 : index
    %4 = vector.load %arg4[%c0_3, %c0_4, %c0_5, %c0_6] : memref<1x1x32x16xi8, #tpu.memory_space<vmem>>, vector<1x1x32x16xi8>
    %c0_i8 = arith.constant 0 : i8
    %5 = vector.broadcast %c0_i8 : i8 to vector<1x1x32x16xi8>
    %6 = arith.cmpi ne, %4, %5 : vector<1x1x32x16xi8>
    %cst_7 = arith.constant -1.000000e+04 : f32
    %7 = vector.broadcast %cst_7 : f32 to vector<1x1x32x16xf32>
    %8 = arith.select %6, %7, %3 : vector<1x1x32x16xi1>, vector<1x1x32x16xf32>
    %cst_8 = arith.constant dense<0xFF800000> : vector<1x1x32xf32>
    %9 = vector.multi_reduction <maximumf>, %8, %cst_8 [3] : vector<1x1x32x16xf32> to vector<1x1x32xf32>
    %10 = vector.shape_cast %9 : vector<1x1x32xf32> to vector<1x1x32x1xf32>
    %11 = vector.broadcast %10 : vector<1x1x32x1xf32> to vector<1x1x32x16xf32>
    %12 = arith.subf %8, %11 : vector<1x1x32x16xf32>
    %13 = math.exp %12 : vector<1x1x32x16xf32>
    %cst_9 = arith.constant dense<0.000000e+00> : vector<1x1x32xf32>
    %14 = vector.multi_reduction <add>, %13, %cst_9 [3] : vector<1x1x32x16xf32> to vector<1x1x32xf32>
    %15 = vector.shape_cast %14 : vector<1x1x32xf32> to vector<1x1x32x1xf32>
    %16 = tpu.reciprocal %15 {approx = true} : vector<1x1x32x1xf32> -> vector<1x1x32x1xf32>
    %17 = vector.broadcast %16 : vector<1x1x32x1xf32> to vector<1x1x32x16xf32>
    %18 = arith.mulf %13, %17 : vector<1x1x32x16xf32>
    %19 = arith.truncf %18 : vector<1x1x32x16xf32> to vector<1x1x32x16xbf16>
    %c0_10 = arith.constant 0 : index
    %c0_11 = arith.constant 0 : index
    %c0_12 = arith.constant 0 : index
    %c0_13 = arith.constant 0 : index
    %20 = vector.load %arg5[%c0_10, %c0_11, %c0_12, %c0_13] : memref<1x1x32x16xbf16, #tpu.memory_space<vmem>>, vector<1x1x32x16xbf16>
    tpu.vector_store %arg5[%c0_10, %c0_11, %c0_12, %c0_13], %19 {strides = array<i32>} : memref<1x1x32x16xbf16, #tpu.memory_space<vmem>>, vector<1x1x32x16xbf16>,
    return
  }
  func.func @transform_0(%arg0: i32, %arg1: i32, %arg2: i32) -> (i32, i32, i32, i32) {
    %c0_i32 = arith.constant 0 : i32
    %c0_i32_0 = arith.constant 0 : i32
    return %arg0, %arg2, %arg1, %c0_i32 : i32, i32, i32, i32
  }
  func.func @transform_1(%arg0: i32, %arg1: i32, %arg2: i32) -> (i32, i32, i32, i32) {
    %c0_i32 = arith.constant 0 : i32
    %c0_i32_0 = arith.constant 0 : i32
    %c0_i32_1 = arith.constant 0 : i32
    return %arg0, %c0_i32, %arg1, %c0_i32_0 : i32, i32, i32, i32
  }
  func.func @transform_2(%arg0: i32, %arg1: i32, %arg2: i32) -> (i32, i32, i32, i32) {
    %c0_i32 = arith.constant 0 : i32
    %c0_i32_0 = arith.constant 0 : i32
    return %arg0, %arg2, %arg1, %c0_i32 : i32, i32, i32, i32
  }
}

</mosaic_0001>

<llo_original>
// kernel: tpu_custom_call.1
$region0: #{tpu_custom_call.1}
  #allocation0 [shape = 'u32[]', space=smem, size = 0x4, offset = 0x4, fixed_abs, tag = 'smem constant byte address 0x4 - core index']
  #allocation1 [shape = 'u32[72,128]{1,0:T(1,128)}', space=vmem, size = 0x9000, scoped, tag = 'internal scratch']
  %s0 = inlined_call_operand.vmem [shape: bf16[1,1,128,16], index: 0, kind: input, shape index: {}]
  %s1 = inlined_call_operand.vmem [shape: s8[1,1,128,16], index: 1, kind: input, shape index: {}]
  %s2 = inlined_call_operand.vmem [shape: bf16[1,1,128,16], index: 2, kind: output, shape index: {}]
  %s3 = sld [smem:[#allocation0]]
  $region41: #{tpu_custom_call.1} parent=0
    _
  %s5 = ssub.s32 1, %s3
  %s6 = scalar_select 0, %s5, %s3
  loop: start=0, step=1, limit=6
  $region2: #{tpu_custom_call.1} parent=0 // loop_pre_header
    _
  $region3: #{tpu_custom_call.1} parent=0 // loop_header
    %s8 = sphi 0, %s12
    %p9 = scmp.ge.s32.totalorder %s8, 6
    %s15 = sphi 0, %s34
    %s16 = sphi 0, %s30
    %s17 = sphi 0, %s26
    %s18 = sphi 0, %s15
    %s19 = sphi 0, %s16
    %s20 = sphi 0, %s17
    %s21 = sphi 0, %s18
    %s22 = sphi 0, %s19
    %s23 = sphi 0, %s20
    %s41 = sphi 0, %s43
    %s44 = sphi 0, %s41
    %s45 = sphi 0, %s44
    %s61 = sphi 0, %s45
    %s69 = sphi 0, %s71
    %s72 = sphi 0, %s69
    %s73 = sphi 0, %s72
    %s89 = sphi 0, %s73
    %s99 = sphi 0, %s101
    %s102 = sphi 0, %s99
    %s103 = sphi 0, %s102
    %s119 = sphi 0, %s103
  $region4: #{tpu_custom_call.1} parent=0 // loop_header_branch
    %11 = sbr.rel (%p9) target = $region8
  $region5: #{tpu_custom_call.1} parent=0 // loop_body
    %s13 = ssub.s32 %s8, 1
    %s14 = ssub.s32 %s8, 2
    %s24 = sadd.s32 1, %s17
    %p25 = scmp.ge.s32.totalorder %s24, 1
    %s26 = scalar_select %p25, 0, %s24
    %s27 = sadd.s32 1, %s16
    %s28 = scalar_select %p25, %s27, %s16
    %p29 = scmp.ge.s32.totalorder %s28, 4
    %s30 = scalar_select %p29, 0, %s28
    %s31 = sadd.s32 1, %s15
    %s32 = scalar_select %p29, %s31, %s15
    %p33 = scmp.ge.s32.totalorder %s32, 1
    %s34 = scalar_select %p33, 0, %s32
    %s35 = ssub.s32 %s15, %s34
    %s36 = ssub.s32 %s17, %s26
    %s37 = sor.u32 %s35, %s36
    %s38 = ssub.s32 %s16, %s30
    %s39 = sor.u32 %s37, %s38
    %p40 = scmp.eq.s32.totalorder %s39, 0
    %s42 = sadd.s32 %s41, 1
    %s43 = scalar_select %p40, %s41, %s42
    %p46 = pneg %p40
    %p47 = scmp.eq.s32.totalorder %s8, 3
    %p48 = por %p46, %p47
    %p49 = scmp.ne.s32.totalorder %s41, %s44
    %p50 = scmp.eq.s32.totalorder %s8, 0
    %p51 = por %p49, %p50
    %p52 = scmp.ne.s32.totalorder %s41, %s44
    %p53 = scmp.eq.s32.totalorder %s13, 3
    %p54 = por %p52, %p53
    %p55 = scmp.ne.s32.totalorder %s44, %s45
    %p56 = scmp.eq.s32.totalorder %s13, 0
    %p57 = por %p55, %p56
    %p58 = scmp.ne.s32.totalorder %s44, %s45
    %p59 = scmp.eq.s32.totalorder %s14, 3
    %p60 = por %p58, %p59
    %p62 = scmp.ne.s32.totalorder %s45, %s61
    %p63 = scmp.eq.s32.totalorder %s14, 0
    %p64 = por %p62, %p63
    %s65 = ssub.s32 %s15, %s34
    %s66 = ssub.s32 %s16, %s30
    %s67 = sor.u32 %s65, %s66
    %p68 = scmp.eq.s32.totalorder %s67, 0
    %s70 = sadd.s32 %s69, 1
    %s71 = scalar_select %p68, %s69, %s70
    %p74 = pneg %p68
    %p75 = scmp.eq.s32.totalorder %s8, 3
    %p76 = por %p74, %p75
    %p77 = scmp.ne.s32.totalorder %s69, %s72
    %p78 = scmp.eq.s32.totalorder %s8, 0
    %p79 = por %p77, %p78
    %p80 = scmp.ne.s32.totalorder %s69, %s72
    %p81 = scmp.eq.s32.totalorder %s13, 3
    %p82 = por %p80, %p81
    %p83 = scmp.ne.s32.totalorder %s72, %s73
    %p84 = scmp.eq.s32.totalorder %s13, 0
    %p85 = por %p83, %p84
    %p86 = scmp.ne.s32.totalorder %s72, %s73
    %p87 = scmp.eq.s32.totalorder %s14, 3
    %p88 = por %p86, %p87
    %p90 = scmp.ne.s32.totalorder %s73, %s89
    %p91 = scmp.eq.s32.totalorder %s14, 0
    %p92 = por %p90, %p91
    %s93 = ssub.s32 %s15, %s34
    %s94 = ssub.s32 %s17, %s26
    %s95 = sor.u32 %s93, %s94
    %s96 = ssub.s32 %s16, %s30
    %s97 = sor.u32 %s95, %s96
    %p98 = scmp.eq.s32.totalorder %s97, 0
    %s100 = sadd.s32 %s99, 1
    %s101 = scalar_select %p98, %s99, %s100
    %p104 = pneg %p98
    %p105 = scmp.eq.s32.totalorder %s8, 3
    %p106 = por %p104, %p105
    %p107 = scmp.ne.s32.totalorder %s99, %s102
    %p108 = scmp.eq.s32.totalorder %s8, 0
    %p109 = por %p107, %p108
    %p110 = scmp.ne.s32.totalorder %s99, %s102
    %p111 = scmp.eq.s32.totalorder %s13, 3
    %p112 = por %p110, %p111
    %p113 = scmp.ne.s32.totalorder %s102, %s103
    %p114 = scmp.eq.s32.totalorder %s13, 0
    %p115 = por %p113, %p114
    %p116 = scmp.ne.s32.totalorder %s102, %s103
    %p117 = scmp.eq.s32.totalorder %s14, 3
    %p118 = por %p116, %p117
    %p120 = scmp.ne.s32.totalorder %s103, %s119
    %p121 = scmp.eq.s32.totalorder %s14, 0
    %p122 = por %p120, %p121
    %p123 = scmp.le.s32.totalorder 1, %s8
    %p124 = scmp.lt.s32.totalorder %s8, 5
    %p125 = pnand %p123, %p124
    %p126 = pneg %p125
    // Predicated region
    $region9: #{tpu_custom_call.1} parent=5 // pred_check
      _
    $region10: #{tpu_custom_call.1} parent=5 // pred_check_branch
      %128 = sbr.rel (%p125) target = $region12
    $region11: #{tpu_custom_call.1} parent=5 // pred_region
      %s129 = ssub.s32 %s8, 1
    $region12: #{tpu_custom_call.1} parent=5 // pred_fallthru
      _
    %p130 = scmp.lt.s32.totalorder %s8, 4
    // Predicated region
    $region13: #{tpu_custom_call.1} parent=5 // pred_check
      %p131 = pneg %p130
    $region14: #{tpu_custom_call.1} parent=5 // pred_check_branch
      %133 = sbr.rel (%p131) target = $region16
    $region15: #{tpu_custom_call.1} parent=5 // pred_region
      // Predicated region
      $region17: #{tpu_custom_call.1} parent=15 // pred_check
        %p134 = pneg %p51
      $region18: #{tpu_custom_call.1} parent=15 // pred_check_branch
        %136 = sbr.rel (%p134) target = $region20
      $region19: #{tpu_custom_call.1} parent=15 // pred_region
        %s137 = smul.u32 4, %s16
        %p138 = scmp.lt.s32.totalorder %s15, 0
        %s139 = scalar_select %p138, %s15, 0
        %p140 = scmp.lt.s32.totalorder %s17, 0
        %s141 = scalar_select %p140, %s17, 0
        %p142 = scmp.lt.s32.totalorder %s137, 15
        %s143 = scalar_select %p142, %s137, 15
        %s144 = smul.addr %s141, 16
        %s145 = sadd.s32 %s143, %s144
        %s146 = smul.addr %s139, 16
        %s147 = sadd.s32 %s145, %s146
        %s148 = smul.addr %s147, 4
        %s149 = scalar_lea.vmem %s0, %s148
        %s150 = smul.u32 4, %s16
      $region20: #{tpu_custom_call.1} parent=15 // pred_fallthru
        _
      // Predicated region
      $region21: #{tpu_custom_call.1} parent=15 // pred_check
        %p151 = pneg %p79
      $region22: #{tpu_custom_call.1} parent=15 // pred_check_branch
        %153 = sbr.rel (%p151) target = $region24
      $region23: #{tpu_custom_call.1} parent=15 // pred_region
        %p154 = scmp.lt.s32.totalorder %s15, 0
        %s155 = scalar_select %p154, %s15, 0
        %p156 = scmp.lt.s32.totalorder %s16, 3
        %s157 = scalar_select %p156, %s16, 3
        %s158 = smul.addr %s155, 4
        %s159 = sadd.s32 %s157, %s158
        %s160 = smul.addr %s159, 8
        %s161 = scalar_lea.vmem %s1, %s160
      $region24: #{tpu_custom_call.1} parent=15 // pred_fallthru
        _
    $region16: #{tpu_custom_call.1} parent=5 // pred_fallthru
      _
    %p162 = scmp.le.s32.totalorder 1, %s8
    %p163 = scmp.lt.s32.totalorder %s8, 5
    %p164 = pnand %p162, %p163
    %p165 = pneg %p164
    // Predicated region
    $region25: #{tpu_custom_call.1} parent=5 // pred_check
      _
    $region26: #{tpu_custom_call.1} parent=5 // pred_check_branch
      %167 = sbr.rel (%p164) target = $region28
    $region27: #{tpu_custom_call.1} parent=5 // pred_region
      %s168 = ssub.s32 %s8, 1
      %s169 = smul.u32 4, %s19
      %p170 = scmp.lt.s32.totalorder %s18, 0
      %s171 = scalar_select %p170, %s18, 0
      %p172 = scmp.lt.s32.totalorder %s20, 0
      %s173 = scalar_select %p172, %s20, 0
      %p174 = scmp.lt.s32.totalorder %s169, 15
      %s175 = scalar_select %p174, %s169, 15
      %s176 = smul.addr %s173, 16
      %s177 = sadd.s32 %s175, %s176
      %s178 = smul.addr %s171, 16
      %s179 = sadd.s32 %s177, %s178
      %s180 = smul.addr %s179, 4
      %s181 = scalar_lea.vmem %s0, %s180
      %p182 = pneg %p57
      %p183 = pneg %p54
      %p184 = scmp.lt.s32.totalorder %s18, 0
      %s185 = scalar_select %p184, %s18, 0
      %p186 = scmp.lt.s32.totalorder %s19, 3
      %s187 = scalar_select %p186, %s19, 3
      %s188 = smul.addr %s185, 4
      %s189 = sadd.s32 %s187, %s188
      %s190 = smul.addr %s189, 8
      %s191 = scalar_lea.vmem %s1, %s190
      %p192 = pneg %p85
      %p193 = pneg %p82
      %p194 = pneg %p115
      %p195 = pneg %p112
      %s196 = smul.u32 4, %s19
      %p197 = scmp.lt.s32.totalorder %s18, 0
      %s198 = scalar_select %p197, %s18, 0
      %p199 = scmp.lt.s32.totalorder %s20, 0
      %s200 = scalar_select %p199, %s20, 0
      %p201 = scmp.lt.s32.totalorder %s196, 15
      %s202 = scalar_select %p201, %s196, 15
      %s203 = smul.addr %s200, 16
      %s204 = sadd.s32 %s202, %s203
      %s205 = smul.addr %s198, 16
      %s206 = sadd.s32 %s204, %s205
      %s207 = smul.addr %s206, 4
      %s208 = scalar_lea.vmem %s2, %s207
      %s209 = smul.u32 4, %s19
      %p210 = scmp.lt.s32.totalorder %s18, 0
      %s211 = scalar_select %p210, %s18, 0
      %p212 = scmp.lt.s32.totalorder %s20, 0
      %s213 = scalar_select %p212, %s20, 0
      %p214 = scmp.lt.s32.totalorder %s209, 15
      %s215 = scalar_select %p214, %s209, 15
      %s216 = smul.addr %s213, 16
      %s217 = sadd.s32 %s215, %s216
      %s218 = smul.addr %s211, 16
      %s219 = sadd.s32 %s217, %s218
      %s220 = smul.addr %s219, 4
      %s221 = scalar_lea.vmem %s0, %s220
      %s222 = smul.u32 4, %s19
      %p223 = scmp.lt.s32.totalorder %s18, 0
      %s224 = scalar_select %p223, %s18, 0
      %p225 = scmp.lt.s32.totalorder %s19, 3
      %s226 = scalar_select %p225, %s19, 3
      %s227 = smul.addr %s224, 4
      %s228 = sadd.s32 %s226, %s227
      %s229 = smul.addr %s228, 8
      %s230 = scalar_lea.vmem %s1, %s229
      %s231 = smul.u32 4, %s19
      %p232 = scmp.lt.s32.totalorder %s18, 0
      %s233 = scalar_select %p232, %s18, 0
      %p234 = scmp.lt.s32.totalorder %s20, 0
      %s235 = scalar_select %p234, %s20, 0
      %p236 = scmp.lt.s32.totalorder %s231, 15
      %s237 = scalar_select %p236, %s231, 15
      %s238 = smul.addr %s235, 16
      %s239 = sadd.s32 %s237, %s238
      %s240 = smul.addr %s233, 16
      %s241 = sadd.s32 %s239, %s240
      %s242 = smul.addr %s241, 4
      %s243 = scalar_lea.vmem %s2, %s242
      %s244 = smul.u32 4, %s19
      %v247 = vld [vmem:[%s221] sm:$0xf]
      %v248 = vld [vmem:[%s221 + $0x4] sm:$0xf]
      %v249 = vld [vmem:[%s221 + $0x8] sm:$0xf]
      %v250 = vld [vmem:[%s221 + $0xc] sm:$0xf]
      %v251 = vunpack.c.l.bf16 %v247
      %v252 = vunpack.c.l.bf16 %v248
      %v253 = vunpack.c.l.bf16 %v249
      %v254 = vunpack.c.l.bf16 %v250
      %v255 = vmul.f32 %v251, 0.125
      %v256 = vmul.f32 %v252, 0.125
      %v257 = vmul.f32 %v253, 0.125
      %v258 = vmul.f32 %v254, 0.125
      %v259 = vld [vmem:[%s230] sm:$0xff]
      %vm260 = vnez %v259
      %v261 = vsel %vm260, 16843009, 0
      %v262 = vunpack.c.0.s8 %v261
      %v263 = vunpack.c.1.s8 %v261
      %v264 = vunpack.c.2.s8 %v261
      %v265 = vunpack.c.3.s8 %v261
      %v266 = vpack.c.b16 %v262, %v262
      %v267 = vpack.c.b8 %v266, %v266
      %v268 = vpack.c.b16 %v263, %v263
      %v269 = vpack.c.b8 %v268, %v268
      %v270 = vpack.c.b16 %v264, %v264
      %v271 = vpack.c.b8 %v270, %v270
      %v272 = vpack.c.b16 %v265, %v265
      %v273 = vpack.c.b8 %v272, %v272
      %vm274 = vnez %v267
      %vm275 = vnez %v269
      %vm276 = vnez %v271
      %vm277 = vnez %v273
      %v278 = vsel %vm274, 16843009, 0
      %v279 = vsel %vm275, 16843009, 0
      %v280 = vsel %vm276, 16843009, 0
      %v281 = vsel %vm277, 16843009, 0
      %v282 = vunpack.c.0.s8 %v278
      %v283 = vunpack.c.0.s8 %v279
      %v284 = vunpack.c.0.s8 %v280
      %v285 = vunpack.c.0.s8 %v281
      %vm286 = vcmp.ne.s32.totalorder %v282, 0
      %vm287 = vcmp.ne.s32.totalorder %v283, 0
      %vm288 = vcmp.ne.s32.totalorder %v284, 0
      %vm289 = vcmp.ne.s32.totalorder %v285, 0
      %v290 = vsel %vm286, -10000.0, %v255
      %v291 = vsel %vm287, -10000.0, %v256
      %v292 = vsel %vm288, -10000.0, %v257
      %v293 = vsel %vm289, -10000.0, %v258
      %vm294 = vcmask 130048
      %v295 = vsel %vm294, %v290, -inf
      %296 = vmax.xlane.f32.xlu0 %v295
      %v297 = vpop.xlane.xlu0 %296
      %v298 = vsel %vm294, %v291, -inf
      %299 = vmax.xlane.f32.xlu0 %v298
      %v300 = vpop.xlane.xlu0 %299
      %v301 = vsel %vm294, %v292, -inf
      %302 = vmax.xlane.f32.xlu0 %v301
      %v303 = vpop.xlane.xlu0 %302
      %v304 = vsel %vm294, %v293, -inf
      %305 = vmax.xlane.f32.xlu0 %v304
      %v306 = vpop.xlane.xlu0 %305
      %v307 = vsub.f32 %v290, %v297
      %v308 = vsub.f32 %v291, %v300
      %v309 = vsub.f32 %v292, %v303
      %v310 = vsub.f32 %v293, %v306
      %v311 = vmul.f32 %v307, 1.442695
      %v312 = vpow.pop %v311
      %v313 = vmul.f32 %v308, 1.442695
      %v314 = vpow.pop %v313
      %v315 = vmul.f32 %v309, 1.442695
      %v316 = vpow.pop %v315
      %v317 = vmul.f32 %v310, 1.442695
      %v318 = vpow.pop %v317
      %v319 = vsel %vm294, %v312, 0.0
      %320 = vadd.xlane.f32.xlu0 %v319
      %v321 = vpop.xlane.xlu0 %320
      %v322 = vsel %vm294, %v314, 0.0
      %323 = vadd.xlane.f32.xlu0 %v322
      %v324 = vpop.xlane.xlu0 %323
      %v325 = vsel %vm294, %v316, 0.0
      %326 = vadd.xlane.f32.xlu0 %v325
      %v327 = vpop.xlane.xlu0 %326
      %v328 = vsel %vm294, %v318, 0.0
      %329 = vadd.xlane.f32.xlu0 %v328
      %v330 = vpop.xlane.xlu0 %329
      %v331 = vrcp.pop %v321
      %v332 = vrcp.pop %v324
      %v333 = vrcp.pop %v327
      %v334 = vrcp.pop %v330
      %v335 = vmul.f32 %v312, %v331
      %v336 = vmul.f32 %v314, %v332
      %v337 = vmul.f32 %v316, %v333
      %v338 = vmul.f32 %v318, %v334
      %v339 = vpack.c.bf16 %v335, %v335
      %v340 = vpack.c.bf16 %v336, %v336
      %v341 = vpack.c.bf16 %v337, %v337
      %v342 = vpack.c.bf16 %v338, %v338
      %vm343 = vcmask 125952
      %344 = vst.msk [vmem:[%s243] sm:$0xf] %vm343, %v339
      %345 = vst.msk [vmem:[%s243 + $0x4] sm:$0xf] %vm343, %v340
      %346 = vst.msk [vmem:[%s243 + $0x8] sm:$0xf] %vm343, %v341
      %347 = vst.msk [vmem:[%s243 + $0xc] sm:$0xf] %vm343, %v342
      %s348 = smul.u32 4, %s19
      %p349 = scmp.lt.s32.totalorder %s18, 0
      %s350 = scalar_select %p349, %s18, 0
      %p351 = scmp.lt.s32.totalorder %s20, 0
      %s352 = scalar_select %p351, %s20, 0
      %p353 = scmp.lt.s32.totalorder %s348, 15
      %s354 = scalar_select %p353, %s348, 15
      %s355 = smul.addr %s352, 16
      %s356 = sadd.s32 %s354, %s355
      %s357 = smul.addr %s350, 16
      %s358 = sadd.s32 %s356, %s357
      %s359 = smul.addr %s358, 4
      %s360 = scalar_lea.vmem %s2, %s359
      // Predicated region
      $region29: #{tpu_custom_call.1} parent=27 // pred_check
        %p361 = pneg %p112
      $region30: #{tpu_custom_call.1} parent=27 // pred_check_branch
        %363 = sbr.rel (%p361) target = $region32
      $region31: #{tpu_custom_call.1} parent=27 // pred_region
        %s364 = smul.u32 4, %s19
      $region32: #{tpu_custom_call.1} parent=27 // pred_fallthru
        _
    $region28: #{tpu_custom_call.1} parent=5 // pred_fallthru
      _
    %p365 = scmp.le.s32.totalorder 2, %s8
    // Predicated region
    $region33: #{tpu_custom_call.1} parent=5 // pred_check
      %p366 = pneg %p365
    $region34: #{tpu_custom_call.1} parent=5 // pred_check_branch
      %368 = sbr.rel (%p366) target = $region36
    $region35: #{tpu_custom_call.1} parent=5 // pred_region
      %s369 = ssub.s32 %s8, 2
      // Predicated region
      $region37: #{tpu_custom_call.1} parent=35 // pred_check
        %p370 = pneg %p118
      $region38: #{tpu_custom_call.1} parent=35 // pred_check_branch
        %372 = sbr.rel (%p370) target = $region40
      $region39: #{tpu_custom_call.1} parent=35 // pred_region
        %s373 = smul.u32 4, %s22
        %p374 = scmp.lt.s32.totalorder %s21, 0
        %s375 = scalar_select %p374, %s21, 0
        %p376 = scmp.lt.s32.totalorder %s23, 0
        %s377 = scalar_select %p376, %s23, 0
        %p378 = scmp.lt.s32.totalorder %s373, 15
        %s379 = scalar_select %p378, %s373, 15
        %s380 = smul.addr %s377, 16
        %s381 = sadd.s32 %s379, %s380
        %s382 = smul.addr %s375, 16
        %s383 = sadd.s32 %s381, %s382
        %s384 = smul.addr %s383, 4
        %s385 = scalar_lea.vmem %s2, %s384
      $region40: #{tpu_custom_call.1} parent=35 // pred_fallthru
        _
    $region36: #{tpu_custom_call.1} parent=5 // pred_fallthru
      _
  $region6: #{tpu_custom_call.1} parent=0 // loop_footer
    %s12 = sadd.s32 1, %s8
  $region7: #{tpu_custom_call.1} parent=0 // loop_footer_branch
    %7 = sbr.rel target = $region3
  $region8: #{tpu_custom_call.1} parent=0 // loop_exit
    _

</llo_original>
